<compile_context>
chip_gen: v6e
topology: v6e:2x2x1
jax: 0.10.0
libtpu: 0.0.40
codegen_flags: <defaults>
</compile_context>

<pallas_src>
import jax
import jax.numpy as jnp
from jax.experimental import pallas as pl
from jax.experimental.pallas import tpu as pltpu

EPS = 1e-5
LANE = 128


def _round_up(v, m):
    return ((v + m - 1) // m) * m


# --------------------------------------------------------------------------
# Kernel
# --------------------------------------------------------------------------
def mlp_bn_kernel(x_ref, w1_ref, bn_ref, w2_ref, b2_ref, o_ref):
    """One grid step handles a TILE_H slice of the hidden dimension.

    The output BlockSpec returns block (0, 0) for every h, so the output
    block stays VMEM-resident across the H reduction axis and is used as the
    accumulator directly (written back to HBM once at the end).
    bn_ref rows: 0 = b1, 1 = gamma, 2 = beta (rows 3..7 are zero padding).
    """
    h_idx = pl.program_id(0)

    @pl.when(h_idx == 0)
    def _():
        # Initialize the resident output block with the broadcast bias.
        o_ref[...] = jnp.broadcast_to(b2_ref[...], o_ref.shape)

    # ---- Linear(D_in, TILE_H) + ReLU ----
    x = x_ref[...]
    h = jnp.dot(x.astype(w1_ref.dtype), w1_ref[...],
                preferred_element_type=jnp.float32)
    h = jnp.maximum(h + bn_ref[0:1, :], 0.0)                    # (N, TILE_H)

    # ---- BatchNorm1d, training mode (batch stats, biased variance) ----
    # Two-pass stats for numerical stability; x is never tiled over N, so
    # x_ref.shape[0] is the full batch size.
    inv_n = 1.0 / x_ref.shape[0]
    mean = jnp.sum(h, axis=0, keepdims=True) * inv_n            # (1, TILE_H)
    diff = h - mean
    var = jnp.sum(diff * diff, axis=0, keepdims=True) * inv_n   # biased var
    inv_std = jax.lax.rsqrt(var + EPS)                          # EUP slot
    scale = bn_ref[1:2, :] * inv_std                            # gamma/std
    h_bn = diff * scale + bn_ref[2:3, :]                        # + beta

    # ---- Linear(TILE_H, D_out_pad): partial product, accumulate over H ----
    o_ref[...] += jnp.dot(h_bn.astype(w2_ref.dtype), w2_ref[...],
                          preferred_element_type=jnp.float32)


# --------------------------------------------------------------------------
# One-time parameter preparation (hoisted out of the per-forward path)
# --------------------------------------------------------------------------
def prepare_params(w1, b1, gamma, beta, w2, b2, *, param_dtype=jnp.float32):
    """Pad feature dims to lane multiples and stack the per-feature vectors.

    Call once per parameter update; the padded copies are reused on every
    forward so no pad ops run in the hot path.  Zero padding contributes
    exactly zero to the output.
    """
    D_in, H = w1.shape
    D_out = w2.shape[1]
    H_pad = _round_up(H, LANE)
    D_out_pad = _round_up(D_out, LANE)

    w1p = jnp.zeros((D_in, H_pad), param_dtype).at[:, :H].set(
        w1.astype(param_dtype))
    w2p = jnp.zeros((H_pad, D_out_pad), param_dtype).at[:H, :D_out].set(
        w2.astype(param_dtype))

    # Stack b1 / gamma / beta into one (8, H_pad) f32 slab -> single DMA per
    # H tile (8 rows for sublane alignment; rows 3..7 are zeros).
    bn = jnp.zeros((8, H_pad), jnp.float32)
    bn = bn.at[0, :H].set(jnp.reshape(b1, (-1,)))
    bn = bn.at[1, :H].set(jnp.reshape(gamma, (-1,)))
    bn = bn.at[2, :H].set(jnp.reshape(beta, (-1,)))

    b2p = jnp.zeros((1, D_out_pad), jnp.float32).at[0, :D_out].set(
        jnp.reshape(b2, (-1,)))

    return {"w1": w1p, "bn": bn, "w2": w2p, "b2": b2p,
            "H": H, "D_out": D_out}


# --------------------------------------------------------------------------
# Forward
# --------------------------------------------------------------------------
def multivaria_linear_forward(x, params, *, tile_h=512):
    N, D_in = x.shape
    w1p, bn, w2p, b2p = params["w1"], params["bn"], params["w2"], params["b2"]
    H_pad = w1p.shape[1]
    D_out_pad = w2p.shape[1]
    D_out = params["D_out"]
    w_bytes = jnp.dtype(w1p.dtype).itemsize

    # --- generation-aware tiling -----------------------------------------
    try:
        vmem_cap = int(pltpu.get_tpu_info().vmem_capacity_bytes)
    except Exception:
        vmem_cap = 64 * 1024 * 1024          # v7x (smallest) as safe fallback
    vmem_budget = vmem_cap // 2              # headroom for compiler scratch

    def step_bytes(th):
        # x resident + double-buffered W1 / bn / W2 / b2 + resident output.
        return (N * D_in * 4
                + 2 * D_in * th * w_bytes
                + 2 * 8 * th * 4
                + 2 * th * D_out_pad * w_bytes
                + 2 * D_out_pad * 4
                + N * D_out_pad * 4)

    # vreg-pressure cap: keep N*tile_h f32 temps (h, diff, h_bn) ~<= 48 vregs.
    vreg_cap = max(LANE, (16384 // max(N, 1)) // LANE * LANE)
    requested = max(LANE, (min(tile_h, H_pad) // LANE) * LANE)

    candidates = [d for d in range(LANE, H_pad + 1, LANE) if H_pad % d == 0]
    tile_h = candidates[0]
    for d in reversed(candidates):
        if d <= requested and d <= vreg_cap and step_bytes(d) <= vmem_budget:
            tile_h = d
            break
    n_h_tiles = H_pad // tile_h

    vmem_limit = int(min(0.9 * vmem_cap,
                         max(2 * step_bytes(tile_h) + (4 << 20), 16 << 20)))

    flops = 2 * N * (D_in * H_pad + H_pad * D_out_pad) + 10 * N * H_pad
    bytes_accessed = (4 * x.size + w_bytes * (w1p.size + w2p.size)
                      + 4 * (bn.size + b2p.size + N * D_out_pad))

    out_padded = pl.pallas_call(
        mlp_bn_kernel,
        out_shape=jax.ShapeDtypeStruct((N, D_out_pad), jnp.float32),
        grid_spec=pltpu.PrefetchScalarGridSpec(
            num_scalar_prefetch=0,
            grid=(n_h_tiles,),
            in_specs=[
                pl.BlockSpec((N, D_in), lambda h: (0, 0)),            # x (resident, never N-tiled)
                pl.BlockSpec((D_in, tile_h), lambda h: (0, h)),       # W1 H-slice
                pl.BlockSpec((8, tile_h), lambda h: (0, h)),          # [b1;gamma;beta] slab
                pl.BlockSpec((tile_h, D_out_pad), lambda h: (h, 0)),  # W2 H-slice
                pl.BlockSpec((1, D_out_pad), lambda h: (0, 0)),       # b2 (resident)
            ],
            out_specs=pl.BlockSpec((N, D_out_pad), lambda h: (0, 0)),  # resident accumulator
        ),
        compiler_params=pltpu.CompilerParams(
            # Single grid axis is the H reduction (accumulates into the
            # resident output block) -> arbitrary.  Do NOT add an N axis:
            # BatchNorm batch stats need the full batch per step.
            dimension_semantics=("arbitrary",),
            vmem_limit_bytes=vmem_limit,
        ),
        cost_estimate=pl.CostEstimate(
            flops=flops,
            transcendentals=H_pad,
            bytes_accessed=bytes_accessed,
        ),
    )(x, w1p, bn, w2p, b2p)

    return out_padded[:, :D_out]


# --------------------------------------------------------------------------
# Pure-JAX reference
# --------------------------------------------------------------------------
def reference_forward(x, w1, b1, gamma, beta, w2, b2):
    h = jnp.maximum(x @ w1 + b1, 0.0)
    mean = h.mean(axis=0, keepdims=True)
    var = ((h - mean) ** 2).mean(axis=0, keepdims=True)
    h = gamma * (h - mean) / jnp.sqrt(var + EPS) + beta
    return h @ w2 + b2


if __name__ == "__main__":
    # Small shapes consistent with the module: batch=8, D_in=32, H=32, D_out=8.
    N, D_in, H, D_out = 8, 32, 32, 8

    key = jax.random.PRNGKey(0)
    kx, kw1, kb1, kw2, kb2 = jax.random.split(key, 5)

    x = jax.random.normal(kx, (N, D_in), dtype=jnp.float32)

    # Deterministic synthetic parameter init (PyTorch-like uniform ranges).
    bound1 = 1.0 / (D_in ** 0.5)
    w1 = jax.random.uniform(kw1, (D_in, H), jnp.float32, -bound1, bound1)
    b1 = jax.random.uniform(kb1, (1, H), jnp.float32, -bound1, bound1)
    gamma = jnp.ones((1, H), jnp.float32)   # BatchNorm1d weight init
    beta = jnp.zeros((1, H), jnp.float32)   # BatchNorm1d bias init
    bound2 = 1.0 / (H ** 0.5)
    w2 = jax.random.uniform(kw2, (H, D_out), jnp.float32, -bound2, bound2)
    b2 = jax.random.uniform(kb2, (1, D_out), jnp.float32, -bound2, bound2)

    # Pad / stack parameters once (hoisted out of the per-forward path).
    params = prepare_params(w1, b1, gamma, beta, w2, b2,
                            param_dtype=jnp.float32)

    out = multivaria_linear_forward(x, params)
    out = jax.block_until_ready(out)

    ref = reference_forward(x, w1, b1, gamma, beta, w2, b2)
    assert out.shape == (N, D_out)
    assert jnp.allclose(out, ref, atol=2e-5, rtol=2e-5), float(
        jnp.max(jnp.abs(out - ref)))

    print("KERNEL_OK")
</pallas_src>

<mosaic_0001>
module attributes {stable_mosaic.version = 11 : i64} {
  func.func @mlp_bn_kernel(%arg0: i32, %arg1: memref<8x32xf32, #tpu.memory_space<vmem>>, %arg2: memref<32x128xf32, #tpu.memory_space<vmem>>, %arg3: memref<8x128xf32, #tpu.memory_space<vmem>>, %arg4: memref<128x128xf32, #tpu.memory_space<vmem>>, %arg5: memref<1x128xf32, #tpu.memory_space<vmem>>, %arg6: memref<8x128xf32, #tpu.memory_space<vmem>>) attributes {dimension_semantics = [#tpu.dimension_semantics<arbitrary>], iteration_bounds = array<i64: 1>, scalar_prefetch = 0 : i64, scratch_operands = 0 : i64, tpu.core_type = #tpu.core_type<tc>, window_params = [{pipeline_mode = #tpu.pipeline_mode<synchronous>, transform_indices = @transform_0, window_bounds = array<i64: 8, 32>}, {transform_indices = @transform_1, window_bounds = array<i64: 32, 128>}, {transform_indices = @transform_2, window_bounds = array<i64: 8, 128>}, {transform_indices = @transform_3, window_bounds = array<i64: 128, 128>}, {pipeline_mode = #tpu.pipeline_mode<synchronous>, transform_indices = @transform_4, window_bounds = array<i64: 1, 128>}, {pipeline_mode = #tpu.pipeline_mode<synchronous>, transform_indices = @transform_5, window_bounds = array<i64: 8, 128>}]} {
    %c0_i32 = arith.constant 0 : i32
    %0 = arith.cmpi eq, %arg0, %c0_i32 : i32
    %1 = arith.extui %0 : i1 to i32
    %c0_i32_0 = arith.constant 0 : i32
    %2 = arith.cmpi ne, %1, %c0_i32_0 : i32
    scf.if %2 {
      %c0_21 = arith.constant 0 : index
      %c0_22 = arith.constant 0 : index
      %37 = vector.load %arg5[%c0_21, %c0_22] : memref<1x128xf32, #tpu.memory_space<vmem>>, vector<1x128xf32>
      %38 = vector.shape_cast %37 : vector<1x128xf32> to vector<1x128xf32>
      %39 = vector.broadcast %38 : vector<1x128xf32> to vector<8x128xf32>
      %c0_23 = arith.constant 0 : index
      %c0_24 = arith.constant 0 : index
      %40 = vector.load %arg6[%c0_23, %c0_24] : memref<8x128xf32, #tpu.memory_space<vmem>>, vector<8x128xf32>
      tpu.vector_store %arg6[%c0_23, %c0_24], %39 {strides = array<i32>} : memref<8x128xf32, #tpu.memory_space<vmem>>, vector<8x128xf32>,
    } else {
    }
    %c0 = arith.constant 0 : index
    %c0_1 = arith.constant 0 : index
    %3 = vector.load %arg1[%c0, %c0_1] : memref<8x32xf32, #tpu.memory_space<vmem>>, vector<8x32xf32>
    %c0_2 = arith.constant 0 : index
    %c0_3 = arith.constant 0 : index
    %4 = vector.load %arg2[%c0_2, %c0_3] : memref<32x128xf32, #tpu.memory_space<vmem>>, vector<32x128xf32>
    %cst = arith.constant dense<0.000000e+00> : vector<8x128xf32>
    %5 = tpu.matmul %3, %4, %cst {dimension_numbers = #tpu.dot_dimension_numbers<[1], [0], [0], [1], [0, 0, 1, 1], [], []>} : vector<8x32xf32>, vector<32x128xf32>, vector<8x128xf32> -> vector<8x128xf32>
    %c0_4 = arith.constant 0 : index
    %c0_5 = arith.constant 0 : index
    %6 = vector.load %arg3[%c0_4, %c0_5] : memref<8x128xf32, #tpu.memory_space<vmem>>, vector<1x128xf32>
    %7 = vector.broadcast %6 : vector<1x128xf32> to vector<8x128xf32>
    %8 = arith.addf %5, %7 : vector<8x128xf32>
    %cst_6 = arith.constant 0.000000e+00 : f32
    %9 = vector.broadcast %cst_6 : f32 to vector<8x128xf32>
    %10 = arith.maximumf %8, %9 : vector<8x128xf32>
    %cst_7 = arith.constant dense<0.000000e+00> : vector<128xf32>
    %11 = vector.multi_reduction <add>, %10, %cst_7 [0] : vector<8x128xf32> to vector<128xf32>
    %12 = vector.shape_cast %11 : vector<128xf32> to vector<1x128xf32>
    %cst_8 = arith.constant 1.250000e-01 : f32
    %13 = vector.broadcast %cst_8 : f32 to vector<1x128xf32>
    %14 = arith.mulf %12, %13 : vector<1x128xf32>
    %15 = vector.broadcast %14 : vector<1x128xf32> to vector<8x128xf32>
    %16 = arith.subf %10, %15 : vector<8x128xf32>
    %17 = arith.mulf %16, %16 : vector<8x128xf32>
    %cst_9 = arith.constant dense<0.000000e+00> : vector<128xf32>
    %18 = vector.multi_reduction <add>, %17, %cst_9 [0] : vector<8x128xf32> to vector<128xf32>
    %19 = vector.shape_cast %18 : vector<128xf32> to vector<1x128xf32>
    %cst_10 = arith.constant 1.250000e-01 : f32
    %20 = vector.broadcast %cst_10 : f32 to vector<1x128xf32>
    %21 = arith.mulf %19, %20 : vector<1x128xf32>
    %cst_11 = arith.constant 9.99999974E-6 : f32
    %22 = vector.broadcast %cst_11 : f32 to vector<1x128xf32>
    %23 = arith.addf %21, %22 : vector<1x128xf32>
    %24 = math.rsqrt %23 : vector<1x128xf32>
    %c1 = arith.constant 1 : index
    %c0_12 = arith.constant 0 : index
    %25 = vector.load %arg3[%c1, %c0_12] : memref<8x128xf32, #tpu.memory_space<vmem>>, vector<1x128xf32>
    %26 = arith.mulf %25, %24 : vector<1x128xf32>
    %27 = vector.broadcast %26 : vector<1x128xf32> to vector<8x128xf32>
    %28 = arith.mulf %16, %27 : vector<8x128xf32>
    %c2 = arith.constant 2 : index
    %c0_13 = arith.constant 0 : index
    %29 = vector.load %arg3[%c2, %c0_13] : memref<8x128xf32, #tpu.memory_space<vmem>>, vector<1x128xf32>
    %30 = vector.broadcast %29 : vector<1x128xf32> to vector<8x128xf32>
    %31 = arith.addf %28, %30 : vector<8x128xf32>
    %c0_14 = arith.constant 0 : index
    %c0_15 = arith.constant 0 : index
    %32 = vector.load %arg6[%c0_14, %c0_15] : memref<8x128xf32, #tpu.memory_space<vmem>>, vector<8x128xf32>
    %c0_16 = arith.constant 0 : index
    %c0_17 = arith.constant 0 : index
    %33 = vector.load %arg4[%c0_16, %c0_17] : memref<128x128xf32, #tpu.memory_space<vmem>>, vector<128x128xf32>
    %cst_18 = arith.constant dense<0.000000e+00> : vector<8x128xf32>
    %34 = tpu.matmul %31, %33, %cst_18 {dimension_numbers = #tpu.dot_dimension_numbers<[1], [0], [0], [1], [0, 0, 1, 1], [], []>} : vector<8x128xf32>, vector<128x128xf32>, vector<8x128xf32> -> vector<8x128xf32>
    %35 = arith.addf %32, %34 : vector<8x128xf32>
    %c0_19 = arith.constant 0 : index
    %c0_20 = arith.constant 0 : index
    %36 = vector.load %arg6[%c0_19, %c0_20] : memref<8x128xf32, #tpu.memory_space<vmem>>, vector<8x128xf32>
    tpu.vector_store %arg6[%c0_19, %c0_20], %35 {strides = array<i32>} : memref<8x128xf32, #tpu.memory_space<vmem>>, vector<8x128xf32>,
    return
  }
  func.func @transform_0(%arg0: i32) -> (i32, i32) {
    %c0_i32 = arith.constant 0 : i32
    %c0_i32_0 = arith.constant 0 : i32
    %c0_i32_1 = arith.constant 0 : i32
    return %c0_i32, %c0_i32_0 : i32, i32
  }
  func.func @transform_1(%arg0: i32) -> (i32, i32) {
    %c0_i32 = arith.constant 0 : i32
    %c0_i32_0 = arith.constant 0 : i32
    return %c0_i32, %arg0 : i32, i32
  }
  func.func @transform_2(%arg0: i32) -> (i32, i32) {
    %c0_i32 = arith.constant 0 : i32
    %c0_i32_0 = arith.constant 0 : i32
    return %c0_i32, %arg0 : i32, i32
  }
  func.func @transform_3(%arg0: i32) -> (i32, i32) {
    %c0_i32 = arith.constant 0 : i32
    %c0_i32_0 = arith.constant 0 : i32
    return %arg0, %c0_i32 : i32, i32
  }
  func.func @transform_4(%arg0: i32) -> (i32, i32) {
    %c0_i32 = arith.constant 0 : i32
    %c0_i32_0 = arith.constant 0 : i32
    %c0_i32_1 = arith.constant 0 : i32
    return %c0_i32, %c0_i32_0 : i32, i32
  }
  func.func @transform_5(%arg0: i32) -> (i32, i32) {
    %c0_i32 = arith.constant 0 : i32
    %c0_i32_0 = arith.constant 0 : i32
    %c0_i32_1 = arith.constant 0 : i32
    return %c0_i32, %c0_i32_0 : i32, i32
  }
}

</mosaic_0001>

<llo_original>
// kernel: tpu_custom_call.1
$region0: #{tpu_custom_call.1}
  #allocation0 [shape = 'u32[]', space=smem, size = 0x4, offset = 0x4, fixed_abs, tag = 'smem constant byte address 0x4 - core index']
  #allocation1 [shape = 'u32[144,128]{1,0:T(1,128)}', space=vmem, size = 0x12000, scoped, tag = 'internal scratch']
  %s0 = inlined_call_operand.hbm [shape: f32[8,32], index: 0, kind: input, shape index: {}]
  %s1 = inlined_call_operand.hbm [shape: f32[32,128], index: 1, kind: input, shape index: {}]
  %s2 = inlined_call_operand.hbm [shape: f32[8,128], index: 2, kind: input, shape index: {}]
  %s3 = inlined_call_operand.hbm [shape: f32[128,128], index: 3, kind: input, shape index: {}]
  %s4 = inlined_call_operand.vmem [shape: f32[1,128], index: 4, kind: input, shape index: {}]
  %s5 = inlined_call_operand.hbm [shape: f32[8,128], index: 5, kind: output, shape index: {}]
  %s6 = sld [smem:[#allocation0]]
  $region50: #{tpu_custom_call.1} parent=0
    _
  %s8 = ssub.s32 1, %s6
  %s9 = scalar_select 0, %s8, %s6
  $region1: #{tpu_custom_call.1} parent=0
    #allocation2 [shape = 'u8[4096]{0}', space=vmem, size = 0x1000, scoped, tag = 'input window, operand 0, single buffered']
    #allocation3 [shape = 's32[1]{0}', space=sflag, size = 0x4, scoped, tag = 'scoped memory for tpu_custom_call.1']
    #allocation4 [shape = 's32[1]{0}', space=sflag, size = 0x4, scoped, tag = 'scoped memory for tpu_custom_call.1']
    #allocation5 [shape = 'u8[16384]{0}', space=vmem, size = 0x4000, scoped, tag = 'input window, operand 1, single buffered']
    #allocation6 [shape = 's32[1]{0}', space=sflag, size = 0x4, scoped, tag = 'scoped memory for tpu_custom_call.1']
    #allocation7 [shape = 'u8[4096]{0}', space=vmem, size = 0x1000, scoped, tag = 'input window, operand 2, single buffered']
    #allocation8 [shape = 'u8[65536]{0}', space=vmem, size = 0x10000, scoped, tag = 'input window, operand 3, single buffered']
    #allocation9 [shape = 's32[1]{0}', space=sflag, size = 0x4, scoped, tag = 'scoped memory for tpu_custom_call.1']
    #allocation10 [shape = 'u8[4096]{0}', space=vmem, size = 0x1000, scoped, tag = 'output window, operand 0, single buffered']
    %10 = vsyncpa [#allocation3], 0
    %11 = vsyncpa [#allocation6], 0
    %12 = vsyncpa [#allocation9], 0
    %13 = vsyncpa [#allocation4], 0
    // Predicated region
    $region2: #{tpu_custom_call.1} parent=1 // pred_check
      _
    $region3: #{tpu_custom_call.1} parent=1 // pred_check_branch
      %15 = sbr.rel (0) target = $region5
    $region4: #{tpu_custom_call.1} parent=1 // pred_region
      %s17 = ssub.s32 128, 128
      %18 = vsyncadd [#allocation3], %s17
      %s20 = sshll.u32 [#allocation2], 4
      %s21 = int_to_ptr.vmem [resolvable:$true] %s20
      %23 = dma.hbm_to_vmem [thread:$0]  %s0, 128, %s21, [#allocation3]
    $region5: #{tpu_custom_call.1} parent=1 // pred_fallthru
      _
    // Predicated region
    $region6: #{tpu_custom_call.1} parent=1 // pred_check
      _
    $region7: #{tpu_custom_call.1} parent=1 // pred_check_branch
      %25 = sbr.rel (0) target = $region9
    $region8: #{tpu_custom_call.1} parent=1 // pred_region
      %s27 = ssub.s32 512, 512
      %28 = vsyncadd [#allocation6], %s27
      %s29 = sshll.u32 [#allocation5], 4
      %s30 = int_to_ptr.vmem [resolvable:$true] %s29
      %35 = dma.hbm_to_vmem [thread:$0]  %s1, 512, %s30, [#allocation6], 128, 128, 8
    $region9: #{tpu_custom_call.1} parent=1 // pred_fallthru
      _
    // Predicated region
    $region10: #{tpu_custom_call.1} parent=1 // pred_check
      _
    $region11: #{tpu_custom_call.1} parent=1 // pred_check_branch
      %37 = sbr.rel (0) target = $region13
    $region12: #{tpu_custom_call.1} parent=1 // pred_region
      %s39 = ssub.s32 128, 128
      %40 = vsyncadd [#allocation6], %s39
      %s42 = sshll.u32 [#allocation7], 4
      %s43 = int_to_ptr.vmem [resolvable:$true] %s42
      %45 = dma.hbm_to_vmem [thread:$0]  %s2, 128, %s43, [#allocation6]
    $region13: #{tpu_custom_call.1} parent=1 // pred_fallthru
      _
    // Predicated region
    $region14: #{tpu_custom_call.1} parent=1 // pred_check
      _
    $region15: #{tpu_custom_call.1} parent=1 // pred_check_branch
      %47 = sbr.rel (0) target = $region17
    $region16: #{tpu_custom_call.1} parent=1 // pred_region
      %s49 = ssub.s32 2048, 2048
      %50 = vsyncadd [#allocation9], %s49
      %s51 = sshll.u32 [#allocation8], 4
      %s52 = int_to_ptr.vmem [resolvable:$true] %s51
      %57 = dma.hbm_to_vmem [thread:$0]  %s3, 2048, %s52, [#allocation9], 128, 128, 8
    $region17: #{tpu_custom_call.1} parent=1 // pred_fallthru
      _
    // Predicated region
    $region18: #{tpu_custom_call.1} parent=1 // pred_check
      _
    $region19: #{tpu_custom_call.1} parent=1 // pred_check_branch
      %59 = sbr.rel (0) target = $region21
    $region20: #{tpu_custom_call.1} parent=1 // pred_region
      _
    $region21: #{tpu_custom_call.1} parent=1 // pred_fallthru
      _
    // Predicated region
    $region22: #{tpu_custom_call.1} parent=1 // pred_check
      _
    $region23: #{tpu_custom_call.1} parent=1 // pred_check_branch
      %61 = sbr.rel (0) target = $region25
    $region24: #{tpu_custom_call.1} parent=1 // pred_region
      %62 = dma.done [#allocation3], 128
    $region25: #{tpu_custom_call.1} parent=1 // pred_fallthru
      _
    // Predicated region
    $region26: #{tpu_custom_call.1} parent=1 // pred_check
      _
    $region27: #{tpu_custom_call.1} parent=1 // pred_check_branch
      %64 = sbr.rel (0) target = $region29
    $region28: #{tpu_custom_call.1} parent=1 // pred_region
      %65 = dma.done [#allocation6], 512
    $region29: #{tpu_custom_call.1} parent=1 // pred_fallthru
      _
    // Predicated region
    $region30: #{tpu_custom_call.1} parent=1 // pred_check
      _
    $region31: #{tpu_custom_call.1} parent=1 // pred_check_branch
      %67 = sbr.rel (0) target = $region33
    $region32: #{tpu_custom_call.1} parent=1 // pred_region
      %68 = dma.done [#allocation6], 128
    $region33: #{tpu_custom_call.1} parent=1 // pred_fallthru
      _
    // Predicated region
    $region34: #{tpu_custom_call.1} parent=1 // pred_check
      _
    $region35: #{tpu_custom_call.1} parent=1 // pred_check_branch
      %70 = sbr.rel (0) target = $region37
    $region36: #{tpu_custom_call.1} parent=1 // pred_region
      %71 = dma.done [#allocation9], 2048
    $region37: #{tpu_custom_call.1} parent=1 // pred_fallthru
      _
    %p72 = scmp.eq.s32.totalorder 0, 0
    // Predicated region
    $region38: #{tpu_custom_call.1} parent=1 // pred_check
      %p73 = pneg %p72
    $region39: #{tpu_custom_call.1} parent=1 // pred_check_branch
      %75 = sbr.rel (%p73) target = $region41
    $region40: #{tpu_custom_call.1} parent=1 // pred_region
      %v76 = vld [vmem:[%s4] sm:$0x1]
      %v78 = vlaneseq
      %v79 = vshrl.u32 %v78, 7
      %v80 = vsub.s32 0, %v79
      %v81 = vrot.slane %v76, %v80
      %83 = vst [vmem:[#allocation10] sm:$0xff] %v81
    $region41: #{tpu_custom_call.1} parent=1 // pred_fallthru
      _
    %v84 = vld [vmem:[#allocation2] sm:$0xff]
    %v85 = vld [vmem:[#allocation5] sm:$0xff]
    %v86 = vld [vmem:[#allocation5 + $0x8] sm:$0xff]
    %v87 = vld [vmem:[#allocation5 + $0x10] sm:$0xff]
    %v88 = vld [vmem:[#allocation5 + $0x18] sm:$0xff]
    %v89 = vld [vmem:[#allocation7] sm:$0x1]
    %v90 = vlaneseq
    %v91 = vshrl.u32 %v90, 7
    %v92 = vsub.s32 0, %v91
    %v93 = vrot.slane %v89, %v92
    %vm94 = vcmask 261120
    %v96 = vsel %vm94, %v84, 0
    %98 = vmatprep.subr.mxu0 0.0
    %99 = vmatpush1.msra.mxu0 0.0
    %100 = vmatprep.subr.mxu0 0.0
    %101 = vmatpush1.msra.mxu0 0.0
    %102 = vmatprep.subr.mxu0 0.0
    %103 = vmatpush1.msra.mxu0 0.0
    %104 = vmatprep.subr.mxu0 0.0
    %105 = vmatpush1.msra.mxu0 0.0
    %106 = vmatprep.subr.mxu0 0.0
    %107 = vmatpush1.msra.mxu0 0.0
    %108 = vmatprep.subr.mxu0 0.0
    %109 = vmatpush1.msra.mxu0 0.0
    %110 = vmatprep.subr.mxu0 0.0
    %111 = vmatpush1.msra.mxu0 0.0
    %112 = vmatprep.subr.mxu0 0.0
    %113 = vmatpush1.msra.mxu0 0.0
    %114 = vmatprep.subr.mxu0 0.0
    %115 = vmatpush1.msra.mxu0 0.0
    %116 = vmatprep.subr.mxu0 0.0
    %117 = vmatpush1.msra.mxu0 0.0
    %118 = vmatprep.subr.mxu0 0.0
    %119 = vmatpush1.msra.mxu0 0.0
    %120 = vmatprep.subr.mxu0 0.0
    %121 = vmatpush1.msra.mxu0 0.0
    %122 = vmatprep.subr.mxu0 0.0
    %123 = vmatpush1.msra.mxu0 %v88
    %124 = vmatprep.subr.mxu0 0.0
    %125 = vmatpush1.msra.mxu0 %v87
    %126 = vmatprep.subr.mxu0 0.0
    %127 = vmatpush1.msra.mxu0 %v86
    %128 = vmatprep.subr.mxu0 0.0
    %129 = vmatpush1.msra.mxu0 %v85
    %130 = vmatprep.subr.mxu0 0.0
    %131 = vmatpush2.msra.mxu0 0.0
    %132 = vmatprep.subr.mxu0 0.0
    %133 = vmatpush2.msra.mxu0 0.0
    %134 = vmatprep.subr.mxu0 0.0
    %135 = vmatpush2.msra.mxu0 0.0
    %136 = vmatprep.subr.mxu0 0.0
    %137 = vmatpush2.msra.mxu0 0.0
    %138 = vmatprep.subr.mxu0 0.0
    %139 = vmatpush2.msra.mxu0 0.0
    %140 = vmatprep.subr.mxu0 0.0
    %141 = vmatpush2.msra.mxu0 0.0
    %142 = vmatprep.subr.mxu0 0.0
    %143 = vmatpush2.msra.mxu0 0.0
    %144 = vmatprep.subr.mxu0 0.0
    %145 = vmatpush2.msra.mxu0 0.0
    %146 = vmatprep.subr.mxu0 0.0
    %147 = vmatpush2.msra.mxu0 0.0
    %148 = vmatprep.subr.mxu0 0.0
    %149 = vmatpush2.msra.mxu0 0.0
    %150 = vmatprep.subr.mxu0 0.0
    %151 = vmatpush2.msra.mxu0 0.0
    %152 = vmatprep.subr.mxu0 0.0
    %153 = vmatpush2.msra.mxu0 0.0
    %154 = vmatprep.subr.mxu0 0.0
    %155 = vmatpush2.msra.mxu0 0.0
    %156 = vmatprep.subr.mxu0 0.0
    %157 = vmatpush2.msra.mxu0 0.0
    %158 = vmatprep.subr.mxu0 0.0
    %159 = vmatpush2.msra.mxu0 0.0
    %160 = vmatprep.subr.mxu0 0.0
    %161 = vmatpush2.msra.mxu0 0.0
    %162 = vmatprep.mubr.f32.mxu0 0.0
    %163 = vmatmul.mubr.f32.gmra.mxu0 %v96
    %v164 = vpop.f32.mrf.mxu0
    %v165 = vadd.f32 %v93, %v164
    %v166 = vpop.f32.mrf.mxu0
    %167 = vdwg.mxu0
    %v168 = vmax.f32 %v165, 0.0
    %v169 = vrot.slane %v168, 4
    %v170 = vadd.f32 %v168, %v169
    %v171 = vrot.slane %v170, 2
    %v172 = vadd.f32 %v170, %v171
    %v173 = vrot.slane %v172, 1
    %v174 = vadd.f32 %v172, %v173
    %v175 = vmul.f32 %v174, 0.125
    %v176 = vsub.f32 %v168, %v175
    %v177 = vmul.f32 %v176, %v176
    %v178 = vrot.slane %v177, 4
    %v179 = vadd.f32 %v177, %v178
    %v180 = vrot.slane %v179, 2
    %v181 = vadd.f32 %v179, %v180
    %v182 = vrot.slane %v181, 1
    %v183 = vadd.f32 %v181, %v182
    %v184 = vmul.f32 %v183, 0.125
    %v185 = vadd.f32 %v184, 1e-05
    %v186 = vrsqrt.pop %v185
    %v187 = vld [vmem:[#allocation7 + $0x1] sm:$0x1]
    %v188 = vmul.f32 %v187, %v186
    %v189 = vlaneseq
    %v190 = vshrl.u32 %v189, 7
    %v191 = vsub.s32 0, %v190
    %v192 = vrot.slane %v188, %v191
    %v193 = vmul.f32 %v176, %v192
    %v194 = vld [vmem:[#allocation7 + $0x2] sm:$0x1]
    %v195 = vlaneseq
    %v196 = vshrl.u32 %v195, 7
    %v197 = vsub.s32 0, %v196
    %v198 = vrot.slane %v194, %v197
    %v199 = vadd.f32 %v193, %v198
    %v200 = vld [vmem:[#allocation10] sm:$0xff]
    %v201 = vld [vmem:[#allocation8] sm:$0xff]
    %v202 = vld [vmem:[#allocation8 + $0x8] sm:$0xff]
    %v203 = vld [vmem:[#allocation8 + $0x10] sm:$0xff]
    %v204 = vld [vmem:[#allocation8 + $0x18] sm:$0xff]
    %v205 = vld [vmem:[#allocation8 + $0x20] sm:$0xff]
    %v206 = vld [vmem:[#allocation8 + $0x28] sm:$0xff]
    %v207 = vld [vmem:[#allocation8 + $0x30] sm:$0xff]
    %v208 = vld [vmem:[#allocation8 + $0x38] sm:$0xff]
    %v209 = vld [vmem:[#allocation8 + $0x40] sm:$0xff]
    %v210 = vld [vmem:[#allocation8 + $0x48] sm:$0xff]
    %v211 = vld [vmem:[#allocation8 + $0x50] sm:$0xff]
    %v212 = vld [vmem:[#allocation8 + $0x58] sm:$0xff]
    %v213 = vld [vmem:[#allocation8 + $0x60] sm:$0xff]
    %v214 = vld [vmem:[#allocation8 + $0x68] sm:$0xff]
    %v215 = vld [vmem:[#allocation8 + $0x70] sm:$0xff]
    %v216 = vld [vmem:[#allocation8 + $0x78] sm:$0xff]
    %217 = vmatprep.subr.mxu0 0.0
    %218 = vmatpush1.msra.mxu0 %v216
    %219 = vmatprep.subr.mxu0 0.0
    %220 = vmatpush1.msra.mxu0 %v215
    %221 = vmatprep.subr.mxu0 0.0
    %222 = vmatpush1.msra.mxu0 %v214
    %223 = vmatprep.subr.mxu0 0.0
    %224 = vmatpush1.msra.mxu0 %v213
    %225 = vmatprep.subr.mxu0 0.0
    %226 = vmatpush1.msra.mxu0 %v212
    %227 = vmatprep.subr.mxu0 0.0
    %228 = vmatpush1.msra.mxu0 %v211
    %229 = vmatprep.subr.mxu0 0.0
    %230 = vmatpush1.msra.mxu0 %v210
    %231 = vmatprep.subr.mxu0 0.0
    %232 = vmatpush1.msra.mxu0 %v209
    %233 = vmatprep.subr.mxu0 0.0
    %234 = vmatpush1.msra.mxu0 %v208
    %235 = vmatprep.subr.mxu0 0.0
    %236 = vmatpush1.msra.mxu0 %v207
    %237 = vmatprep.subr.mxu0 0.0
    %238 = vmatpush1.msra.mxu0 %v206
    %239 = vmatprep.subr.mxu0 0.0
    %240 = vmatpush1.msra.mxu0 %v205
    %241 = vmatprep.subr.mxu0 0.0
    %242 = vmatpush1.msra.mxu0 %v204
    %243 = vmatprep.subr.mxu0 0.0
    %244 = vmatpush1.msra.mxu0 %v203
    %245 = vmatprep.subr.mxu0 0.0
    %246 = vmatpush1.msra.mxu0 %v202
    %247 = vmatprep.subr.mxu0 0.0
    %248 = vmatpush1.msra.mxu0 %v201
    %249 = vmatprep.subr.mxu0 0.0
    %250 = vmatpush2.msra.mxu0 0.0
    %251 = vmatprep.subr.mxu0 0.0
    %252 = vmatpush2.msra.mxu0 0.0
    %253 = vmatprep.subr.mxu0 0.0
    %254 = vmatpush2.msra.mxu0 0.0
    %255 = vmatprep.subr.mxu0 0.0
    %256 = vmatpush2.msra.mxu0 0.0
    %257 = vmatprep.subr.mxu0 0.0
    %258 = vmatpush2.msra.mxu0 0.0
    %259 = vmatprep.subr.mxu0 0.0
    %260 = vmatpush2.msra.mxu0 0.0
    %261 = vmatprep.subr.mxu0 0.0
    %262 = vmatpush2.msra.mxu0 0.0
    %263 = vmatprep.subr.mxu0 0.0
    %264 = vmatpush2.msra.mxu0 0.0
    %265 = vmatprep.subr.mxu0 0.0
    %266 = vmatpush2.msra.mxu0 0.0
    %267 = vmatprep.subr.mxu0 0.0
    %268 = vmatpush2.msra.mxu0 0.0
    %269 = vmatprep.subr.mxu0 0.0
    %270 = vmatpush2.msra.mxu0 0.0
    %271 = vmatprep.subr.mxu0 0.0
    %272 = vmatpush2.msra.mxu0 0.0
    %273 = vmatprep.subr.mxu0 0.0
    %274 = vmatpush2.msra.mxu0 0.0
    %275 = vmatprep.subr.mxu0 0.0
    %276 = vmatpush2.msra.mxu0 0.0
    %277 = vmatprep.subr.mxu0 0.0
    %278 = vmatpush2.msra.mxu0 0.0
    %279 = vmatprep.subr.mxu0 0.0
    %280 = vmatpush2.msra.mxu0 0.0
    %281 = vmatprep.mubr.f32.mxu0 0.0
    %282 = vmatmul.mubr.f32.gmra.mxu0 %v199
    %v283 = vpop.f32.mrf.mxu0
    %v284 = vadd.f32 0.0, %v283
    %v285 = vpop.f32.mrf.mxu0
    %286 = vdwg.mxu0
    %v287 = vadd.f32 %v200, %v284
    %288 = vst [vmem:[#allocation10] sm:$0xff] %v287
    // Predicated region
    $region42: #{tpu_custom_call.1} parent=1 // pred_check
      _
    $region43: #{tpu_custom_call.1} parent=1 // pred_check_branch
      %290 = sbr.rel (0) target = $region45
    $region44: #{tpu_custom_call.1} parent=1 // pred_region
      %s292 = ssub.s32 128, 128
      %293 = vsyncadd [#allocation4], %s292
      %s295 = sshll.u32 [#allocation10], 4
      %s296 = int_to_ptr.vmem [resolvable:$true] %s295
      %298 = dma.vmem_to_hbm [thread:$0]  %s296, 128, %s5, [#allocation4]
    $region45: #{tpu_custom_call.1} parent=1 // pred_fallthru
      _
    // Predicated region
    $region46: #{tpu_custom_call.1} parent=1 // pred_check
      _
    $region47: #{tpu_custom_call.1} parent=1 // pred_check_branch
      %300 = sbr.rel (0) target = $region49
    $region48: #{tpu_custom_call.1} parent=1 // pred_region
      %301 = dma.done [#allocation4], 128
    $region49: #{tpu_custom_call.1} parent=1 // pred_fallthru
      _
    %302 = vsyncpa [#allocation3], 1
    %303 = vsyncpa [#allocation6], 1
    %304 = vsyncpa [#allocation9], 1
    %305 = vsyncpa [#allocation4], 1

</llo_original>
